<compile_context>
chip_gen: v7x
topology: tpu7x:2x2x1
jax: 0.10.0
libtpu: 0.0.40
codegen_flags: <defaults>
</compile_context>

<pallas_src>
import functools

import jax
import jax.numpy as jnp
from jax import lax
from jax.experimental import pallas as pl
from jax.experimental.pallas import tpu as pltpu


# ------------------------------ Pallas kernels -------------------------------

def _se_fused_kernel(x_ref, w1_ref, b1_ref, w2_ref, b2_ref, o_ref, *, inv_hw):
    """Fully fused SE for one batch element resident in VMEM.

    Blocks: x_ref/o_ref = (1, C, HW); weights replicated.  x is loaded once:
      pooled = mean(x, spatial)             (f32 accumulation)
      s      = sigmoid(fc2(relu(fc1(pooled))))
      out    = s * x                        (f32 multiply, cast on store)
    """
    xf = x_ref[...].astype(jnp.float32)                        # (1, C, HW)
    pooled = jnp.sum(xf, axis=-1) * inv_hw                     # (1, C)
    h = jnp.dot(pooled, w1_ref[...],
                preferred_element_type=jnp.float32) + b1_ref[...]
    h = jnp.maximum(h, 0.0)                                    # ReLU
    z = jnp.dot(h, w2_ref[...],
                preferred_element_type=jnp.float32) + b2_ref[...]
    s = 1.0 / (1.0 + jnp.exp(-z))                              # sigmoid (f32)
    o_ref[...] = (xf * s[:, :, None]).astype(o_ref.dtype)


def _se_pool_kernel(x_ref, p_ref, *, inv_hw):
    """Per-row mean over the full (contiguous) spatial axis.  Block (tr, HW)."""
    p_ref[...] = jnp.sum(x_ref[...].astype(jnp.float32), axis=-1,
                         keepdims=True) * inv_hw


def _se_apply_kernel(x_ref, s_ref, o_ref):
    """out = scale * x with the multiply in f32 (cast only on store)."""
    o_ref[...] = (x_ref[...].astype(jnp.float32) * s_ref[...]).astype(o_ref.dtype)


# ------------------------------ wrapper (JAX) --------------------------------

# Conservative: stays below the 16 MiB scoped-VMEM default on v5e and leaves
# plenty of headroom under v7x's 64 MiB physical / 32 MiB scoped default.
_VMEM_BUDGET = 14 * 1024 * 1024


def _row_tile(rows, row_bytes, target_bytes=2 << 20, max_rows=1024):
    """Row-block size: multiple of 8 (or full), sized to ~target_bytes/block."""
    if rows <= 8:
        return rows
    tr = target_bytes // max(int(row_bytes), 1)
    tr = max(8, min(tr, max_rows, rows))
    tr -= tr % 8
    return max(tr, 8)


def squeeze_excitation(x_nchw, params, *, vmem_budget=_VMEM_BUDGET):
    """SE forward pass.  x_nchw: [N, C, H, W].  params hold Conv2d-style
    weights: w1 [S, C, 1, 1], b1 [S], w2 [C, S, 1, 1], b2 [C]."""
    N, C, H, W = x_nchw.shape
    HW = H * W
    S = params["w1"].shape[0]
    dt = x_nchw.dtype
    itemsize = x_nchw.dtype.itemsize

    # 1x1 convs on a 1x1 spatial map are plain matmuls.
    w1 = params["w1"][:, :, 0, 0].T.astype(jnp.float32)        # [C, S]
    b1 = params["b1"].reshape(1, S).astype(jnp.float32)
    w2 = params["w2"][:, :, 0, 0].T.astype(jnp.float32)        # [S, C]
    b2 = params["b2"].reshape(1, C).astype(jnp.float32)

    slab_bytes = C * HW * itemsize
    # Fused path VMEM: double-buffered x-in and out slabs (+ tiny weights).
    fused_vmem = 4 * slab_bytes + 4 * (w1.size + b1.size + w2.size + b2.size)

    if fused_vmem <= vmem_budget:
        # ---------------- fused single pass: pool + FC + apply ----------------
        x3 = x_nchw.reshape(N, C, HW)                  # free reshape (contiguous)
        out3 = pl.pallas_call(
            functools.partial(_se_fused_kernel, inv_hw=1.0 / HW),
            out_shape=jax.ShapeDtypeStruct((N, C, HW), dt),
            grid=(N,),
            in_specs=[
                pl.BlockSpec((1, C, HW), lambda n: (n, 0, 0)),
                pl.BlockSpec((C, S), lambda n: (0, 0)),    # fc1 weight
                pl.BlockSpec((1, S), lambda n: (0, 0)),    # fc1 bias
                pl.BlockSpec((S, C), lambda n: (0, 0)),    # fc2 weight
                pl.BlockSpec((1, C), lambda n: (0, 0)),    # fc2 bias
            ],
            out_specs=pl.BlockSpec((1, C, HW), lambda n: (n, 0, 0)),
            compiler_params=pltpu.CompilerParams(
                dimension_semantics=("parallel",)),
        )(x3, w1, b1, w2, b2)
        return out3.reshape(N, C, H, W)

    # ------------- fallback: per-n slab too big -> two lane-dense passes -----
    R = N * C
    x2 = x_nchw.reshape(R, HW)
    tr = _row_tile(R, HW * itemsize)

    pooled = pl.pallas_call(
        functools.partial(_se_pool_kernel, inv_hw=1.0 / HW),
        out_shape=jax.ShapeDtypeStruct((R, 1), jnp.float32),
        grid=(pl.cdiv(R, tr),),
        in_specs=[pl.BlockSpec((tr, HW), lambda i: (i, 0))],
        out_specs=pl.BlockSpec((tr, 1), lambda i: (i, 0)),
        compiler_params=pltpu.CompilerParams(
            dimension_semantics=("parallel",)),
    )(x2)

    # Tiny FC + ReLU + FC + sigmoid epilogue in plain JAX (negligible cost).
    p = pooled.reshape(N, C)
    h = jnp.maximum(p @ w1 + b1, 0.0)
    scale = jax.nn.sigmoid(h @ w2 + b2)                        # [N, C], f32
    s2 = scale.reshape(R, 1)

    out2 = pl.pallas_call(
        _se_apply_kernel,
        out_shape=jax.ShapeDtypeStruct((R, HW), dt),
        grid=(pl.cdiv(R, tr),),
        in_specs=[
            pl.BlockSpec((tr, HW), lambda i: (i, 0)),
            pl.BlockSpec((tr, 1), lambda i: (i, 0)),
        ],
        out_specs=pl.BlockSpec((tr, HW), lambda i: (i, 0)),
        compiler_params=pltpu.CompilerParams(
            dimension_semantics=("parallel",)),
    )(x2, s2)

    return out2.reshape(N, C, H, W)


# ---------------------------- pure-JAX reference -----------------------------

def reference(x, params):
    """Mirrors the PyTorch module: AdaptiveAvgPool2d(1) -> 1x1 conv -> ReLU ->
    1x1 conv -> Sigmoid -> scale * input."""
    def conv1x1(t, w):
        return lax.conv_general_dilated(
            t, w, (1, 1), "VALID",
            dimension_numbers=("NCHW", "OIHW", "NCHW"))

    pooled = jnp.mean(x, axis=(2, 3), keepdims=True)           # [N, C, 1, 1]
    h = conv1x1(pooled, params["w1"]) + params["b1"][None, :, None, None]
    h = jax.nn.relu(h)
    z = conv1x1(h, params["w2"]) + params["b2"][None, :, None, None]
    s = jax.nn.sigmoid(z)                                      # [N, C, 1, 1]
    return s * x


# ----------------------------------- main ------------------------------------

if __name__ == "__main__":
    # Small but non-trivial shapes (RegNet-style SE: squeeze ratio 4).
    N, C, S, H, W = 2, 64, 16, 32, 32

    key = jax.random.PRNGKey(0)
    kx, k1, k2, k3, k4 = jax.random.split(key, 5)
    x = jax.random.normal(kx, (N, C, H, W), jnp.float32)
    params = {
        "w1": jax.random.normal(k1, (S, C, 1, 1), jnp.float32) * (C ** -0.5),
        "b1": jax.random.normal(k2, (S,), jnp.float32) * 0.1,
        "w2": jax.random.normal(k3, (C, S, 1, 1), jnp.float32) * (S ** -0.5),
        "b2": jax.random.normal(k4, (C,), jnp.float32) * 0.1,
    }

    ref = jax.block_until_ready(reference(x, params))

    # Primary fused single-pass path.
    out_fused = jax.block_until_ready(squeeze_excitation(x, params))
    assert out_fused.shape == ref.shape == (N, C, H, W)
    err_fused = float(jnp.max(jnp.abs(out_fused - ref)))
    assert err_fused < 1e-3, f"fused path max abs error too large: {err_fused}"

    # Exercise the large-shape fallback path too (force it via a tiny budget).
    out_split = jax.block_until_ready(
        squeeze_excitation(x, params, vmem_budget=0))
    err_split = float(jnp.max(jnp.abs(out_split - ref)))
    assert err_split < 1e-3, f"split path max abs error too large: {err_split}"

    print("KERNEL_OK")
</pallas_src>

<mosaic_0001>
module attributes {stable_mosaic.version = 11 : i64} {
  func.func @_se_fused_kernel(%arg0: i32, %arg1: memref<1x64x1024xf32, #tpu.memory_space<vmem>>, %arg2: memref<64x16xf32, #tpu.memory_space<vmem>>, %arg3: memref<1x16xf32, #tpu.memory_space<vmem>>, %arg4: memref<16x64xf32, #tpu.memory_space<vmem>>, %arg5: memref<1x64xf32, #tpu.memory_space<vmem>>, %arg6: memref<1x64x1024xf32, #tpu.memory_space<vmem>>) attributes {dimension_semantics = [#tpu.dimension_semantics<parallel>], iteration_bounds = array<i64: 2>, scalar_prefetch = 0 : i64, scratch_operands = 0 : i64, tpu.core_type = #tpu.core_type<tc>, window_params = [{transform_indices = @transform_0, window_bounds = array<i64: 1, 64, 1024>}, {pipeline_mode = #tpu.pipeline_mode<synchronous>, transform_indices = @transform_1, window_bounds = array<i64: 64, 16>}, {pipeline_mode = #tpu.pipeline_mode<synchronous>, transform_indices = @transform_2, window_bounds = array<i64: 1, 16>}, {pipeline_mode = #tpu.pipeline_mode<synchronous>, transform_indices = @transform_3, window_bounds = array<i64: 16, 64>}, {pipeline_mode = #tpu.pipeline_mode<synchronous>, transform_indices = @transform_4, window_bounds = array<i64: 1, 64>}, {transform_indices = @transform_5, window_bounds = array<i64: 1, 64, 1024>}]} {
    %c0 = arith.constant 0 : index
    %c0_0 = arith.constant 0 : index
    %c0_1 = arith.constant 0 : index
    %0 = vector.load %arg1[%c0, %c0_0, %c0_1] : memref<1x64x1024xf32, #tpu.memory_space<vmem>>, vector<1x64x1024xf32>
    %cst = arith.constant dense<0.000000e+00> : vector<1x64xf32>
    %1 = vector.multi_reduction <add>, %0, %cst [2] : vector<1x64x1024xf32> to vector<1x64xf32>
    %cst_2 = arith.constant 9.765625E-4 : f32
    %2 = vector.broadcast %cst_2 : f32 to vector<1x64xf32>
    %3 = arith.mulf %1, %2 : vector<1x64xf32>
    %c0_3 = arith.constant 0 : index
    %c0_4 = arith.constant 0 : index
    %4 = vector.load %arg2[%c0_3, %c0_4] : memref<64x16xf32, #tpu.memory_space<vmem>>, vector<64x16xf32>
    %cst_5 = arith.constant dense<0.000000e+00> : vector<1x16xf32>
    %5 = tpu.matmul %3, %4, %cst_5 {dimension_numbers = #tpu.dot_dimension_numbers<[1], [0], [0], [1], [0, 0, 1, 1], [], []>} : vector<1x64xf32>, vector<64x16xf32>, vector<1x16xf32> -> vector<1x16xf32>
    %c0_6 = arith.constant 0 : index
    %c0_7 = arith.constant 0 : index
    %6 = vector.load %arg3[%c0_6, %c0_7] : memref<1x16xf32, #tpu.memory_space<vmem>>, vector<1x16xf32>
    %7 = arith.addf %5, %6 : vector<1x16xf32>
    %cst_8 = arith.constant 0.000000e+00 : f32
    %8 = vector.broadcast %cst_8 : f32 to vector<1x16xf32>
    %9 = arith.maximumf %7, %8 : vector<1x16xf32>
    %c0_9 = arith.constant 0 : index
    %c0_10 = arith.constant 0 : index
    %10 = vector.load %arg4[%c0_9, %c0_10] : memref<16x64xf32, #tpu.memory_space<vmem>>, vector<16x64xf32>
    %cst_11 = arith.constant dense<0.000000e+00> : vector<1x64xf32>
    %11 = tpu.matmul %9, %10, %cst_11 {dimension_numbers = #tpu.dot_dimension_numbers<[1], [0], [0], [1], [0, 0, 1, 1], [], []>} : vector<1x16xf32>, vector<16x64xf32>, vector<1x64xf32> -> vector<1x64xf32>
    %c0_12 = arith.constant 0 : index
    %c0_13 = arith.constant 0 : index
    %12 = vector.load %arg5[%c0_12, %c0_13] : memref<1x64xf32, #tpu.memory_space<vmem>>, vector<1x64xf32>
    %13 = arith.addf %11, %12 : vector<1x64xf32>
    %cst_14 = arith.constant 0.000000e+00 : f32
    %14 = vector.broadcast %cst_14 : f32 to vector<1x64xf32>
    %15 = arith.subf %14, %13 : vector<1x64xf32>
    %16 = math.exp %15 : vector<1x64xf32>
    %cst_15 = arith.constant 1.000000e+00 : f32
    %17 = vector.broadcast %cst_15 : f32 to vector<1x64xf32>
    %18 = arith.addf %17, %16 : vector<1x64xf32>
    %cst_16 = arith.constant 1.000000e+00 : f32
    %19 = vector.broadcast %cst_16 : f32 to vector<1x64xf32>
    %20 = arith.divf %19, %18 : vector<1x64xf32>
    %21 = vector.shape_cast %20 : vector<1x64xf32> to vector<1x64x1xf32>
    %22 = vector.broadcast %21 : vector<1x64x1xf32> to vector<1x64x1024xf32>
    %23 = arith.mulf %0, %22 : vector<1x64x1024xf32>
    %c0_17 = arith.constant 0 : index
    %c0_18 = arith.constant 0 : index
    %c0_19 = arith.constant 0 : index
    %24 = vector.load %arg6[%c0_17, %c0_18, %c0_19] : memref<1x64x1024xf32, #tpu.memory_space<vmem>>, vector<1x64x1024xf32>
    tpu.vector_store %arg6[%c0_17, %c0_18, %c0_19], %23 {strides = array<i32>} : memref<1x64x1024xf32, #tpu.memory_space<vmem>>, vector<1x64x1024xf32>,
    return
  }
  func.func @transform_0(%arg0: i32) -> (i32, i32, i32) {
    %c0_i32 = arith.constant 0 : i32
    %c0_i32_0 = arith.constant 0 : i32
    %c0_i32_1 = arith.constant 0 : i32
    return %arg0, %c0_i32, %c0_i32_0 : i32, i32, i32
  }
  func.func @transform_1(%arg0: i32) -> (i32, i32) {
    %c0_i32 = arith.constant 0 : i32
    %c0_i32_0 = arith.constant 0 : i32
    %c0_i32_1 = arith.constant 0 : i32
    return %c0_i32, %c0_i32_0 : i32, i32
  }
  func.func @transform_2(%arg0: i32) -> (i32, i32) {
    %c0_i32 = arith.constant 0 : i32
    %c0_i32_0 = arith.constant 0 : i32
    %c0_i32_1 = arith.constant 0 : i32
    return %c0_i32, %c0_i32_0 : i32, i32
  }
  func.func @transform_3(%arg0: i32) -> (i32, i32) {
    %c0_i32 = arith.constant 0 : i32
    %c0_i32_0 = arith.constant 0 : i32
    %c0_i32_1 = arith.constant 0 : i32
    return %c0_i32, %c0_i32_0 : i32, i32
  }
  func.func @transform_4(%arg0: i32) -> (i32, i32) {
    %c0_i32 = arith.constant 0 : i32
    %c0_i32_0 = arith.constant 0 : i32
    %c0_i32_1 = arith.constant 0 : i32
    return %c0_i32, %c0_i32_0 : i32, i32
  }
  func.func @transform_5(%arg0: i32) -> (i32, i32, i32) {
    %c0_i32 = arith.constant 0 : i32
    %c0_i32_0 = arith.constant 0 : i32
    %c0_i32_1 = arith.constant 0 : i32
    return %arg0, %c0_i32, %c0_i32_0 : i32, i32, i32
  }
}

</mosaic_0001>

<llo_original>
// kernel: tpu_custom_call.1
$region0: #{tpu_custom_call.1}
  #allocation0 [shape = 'u32[]', space=smem, size = 0x4, offset = 0x4, fixed_abs, tag = 'smem constant byte address 0x4 - core index']
  #allocation1 [shape = 'u32[144,128]{1,0:T(1,128)}', space=vmem, size = 0x12000, scoped, tag = 'internal scratch']
  %s0 = inlined_call_operand.hbm [shape: f32[2,64,1024], index: 0, kind: input, shape index: {}]
  %s1 = inlined_call_operand.vmem [shape: f32[64,16], index: 1, kind: input, shape index: {}]
  %s2 = inlined_call_operand.vmem [shape: f32[1,16], index: 2, kind: input, shape index: {}]
  %s3 = inlined_call_operand.vmem [shape: f32[16,64], index: 3, kind: input, shape index: {}]
  %s4 = inlined_call_operand.vmem [shape: f32[1,64], index: 4, kind: input, shape index: {}]
  %s5 = inlined_call_operand.hbm [shape: f32[2,64,1024], index: 5, kind: output, shape index: {}]
  %s6 = sld [smem:[#allocation0]]
  $region57: #{tpu_custom_call.1} parent=0
    _
  %s8 = ssub.s32 1, %s6
  %s9 = scalar_select 0, %s8, %s6
  $region1: #{tpu_custom_call.1} parent=0
    #allocation2 [shape = 'u8[524288]{0}', space=vmem, size = 0x80000, scoped, tag = 'input window, operand 0']
    #allocation3 [shape = 's32[2]{0}', space=sflag, size = 0x8, scoped, tag = 'scoped memory for tpu_custom_call.1']
    #allocation4 [shape = 's32[2]{0}', space=sflag, size = 0x8, scoped, tag = 'scoped memory for tpu_custom_call.1']
    #allocation5 [shape = 'u8[524288]{0}', space=vmem, size = 0x80000, scoped, tag = 'output window, operand 0']
    %10 = vsyncpa [#allocation3], 0
    %s11 = scalar_lea.sflag [#allocation3], 1
    %12 = vsyncpa %s11, 0
    %13 = vsyncpa [#allocation4], 0
    %s14 = scalar_lea.sflag [#allocation4], 1
    %15 = vsyncpa %s14, 0
    loop: start=0, step=1, limit=4
    $region2: #{tpu_custom_call.1} parent=1 // loop_pre_header
      _
    $region3: #{tpu_custom_call.1} parent=1 // loop_header
      %s17 = sphi 0, %s21
      %p18 = scmp.ge.s32.totalorder %s17, 4
      %s27 = sphi 0, %s29
      %s30 = sphi 0, %s27
      %s31 = sphi 0, %s30
      %s47 = sphi 0, %s31
      %s51 = sphi 0, %s51
      %s53 = sphi 0, %s51
      %s54 = sphi 0, %s53
      %s68 = sphi 0, %s54
      %s72 = sphi 0, %s72
      %s74 = sphi 0, %s72
      %s75 = sphi 0, %s74
      %s89 = sphi 0, %s75
      %s93 = sphi 0, %s93
      %s95 = sphi 0, %s93
      %s96 = sphi 0, %s95
      %s110 = sphi 0, %s96
      %s114 = sphi 0, %s114
      %s116 = sphi 0, %s114
      %s117 = sphi 0, %s116
      %s131 = sphi 0, %s117
      %s137 = sphi 0, %s139
      %s140 = sphi 0, %s137
      %s141 = sphi 0, %s140
      %s157 = sphi 0, %s141
    $region4: #{tpu_custom_call.1} parent=1 // loop_header_branch
      %20 = sbr.rel (%p18) target = $region8
    $region5: #{tpu_custom_call.1} parent=1 // loop_body
      %s22 = ssub.s32 %s17, 1
      %s23 = ssub.s32 %s17, 2
      %s24 = sadd.s32 %s17, 1
      %s25 = ssub.s32 %s17, %s24
      %p26 = scmp.eq.s32.totalorder %s25, 0
      %s28 = sadd.s32 %s27, 1
      %s29 = scalar_select %p26, %s27, %s28
      %p32 = pneg %p26
      %p33 = scmp.eq.s32.totalorder %s17, 1
      %p34 = por %p32, %p33
      %p35 = scmp.ne.s32.totalorder %s27, %s30
      %p36 = scmp.eq.s32.totalorder %s17, 0
      %p37 = por %p35, %p36
      %p38 = scmp.ne.s32.totalorder %s27, %s30
      %p39 = scmp.eq.s32.totalorder %s22, 1
      %p40 = por %p38, %p39
      %p41 = scmp.ne.s32.totalorder %s30, %s31
      %p42 = scmp.eq.s32.totalorder %s22, 0
      %p43 = por %p41, %p42
      %p44 = scmp.ne.s32.totalorder %s30, %s31
      %p45 = scmp.eq.s32.totalorder %s23, 1
      %p46 = por %p44, %p45
      %p48 = scmp.ne.s32.totalorder %s31, %s47
      %p49 = scmp.eq.s32.totalorder %s23, 0
      %p50 = por %p48, %p49
      %s52 = sadd.s32 %s51, 1
      %p55 = scmp.eq.s32.totalorder %s17, 1
      %p56 = scmp.ne.s32.totalorder %s51, %s53
      %p57 = scmp.eq.s32.totalorder %s17, 0
      %p58 = por %p56, %p57
      %p59 = scmp.ne.s32.totalorder %s51, %s53
      %p60 = scmp.eq.s32.totalorder %s22, 1
      %p61 = por %p59, %p60
      %p62 = scmp.ne.s32.totalorder %s53, %s54
      %p63 = scmp.eq.s32.totalorder %s22, 0
      %p64 = por %p62, %p63
      %p65 = scmp.ne.s32.totalorder %s53, %s54
      %p66 = scmp.eq.s32.totalorder %s23, 1
      %p67 = por %p65, %p66
      %p69 = scmp.ne.s32.totalorder %s54, %s68
      %p70 = scmp.eq.s32.totalorder %s23, 0
      %p71 = por %p69, %p70
      %s73 = sadd.s32 %s72, 1
      %p76 = scmp.eq.s32.totalorder %s17, 1
      %p77 = scmp.ne.s32.totalorder %s72, %s74
      %p78 = scmp.eq.s32.totalorder %s17, 0
      %p79 = por %p77, %p78
      %p80 = scmp.ne.s32.totalorder %s72, %s74
      %p81 = scmp.eq.s32.totalorder %s22, 1
      %p82 = por %p80, %p81
      %p83 = scmp.ne.s32.totalorder %s74, %s75
      %p84 = scmp.eq.s32.totalorder %s22, 0
      %p85 = por %p83, %p84
      %p86 = scmp.ne.s32.totalorder %s74, %s75
      %p87 = scmp.eq.s32.totalorder %s23, 1
      %p88 = por %p86, %p87
      %p90 = scmp.ne.s32.totalorder %s75, %s89
      %p91 = scmp.eq.s32.totalorder %s23, 0
      %p92 = por %p90, %p91
      %s94 = sadd.s32 %s93, 1
      %p97 = scmp.eq.s32.totalorder %s17, 1
      %p98 = scmp.ne.s32.totalorder %s93, %s95
      %p99 = scmp.eq.s32.totalorder %s17, 0
      %p100 = por %p98, %p99
      %p101 = scmp.ne.s32.totalorder %s93, %s95
      %p102 = scmp.eq.s32.totalorder %s22, 1
      %p103 = por %p101, %p102
      %p104 = scmp.ne.s32.totalorder %s95, %s96
      %p105 = scmp.eq.s32.totalorder %s22, 0
      %p106 = por %p104, %p105
      %p107 = scmp.ne.s32.totalorder %s95, %s96
      %p108 = scmp.eq.s32.totalorder %s23, 1
      %p109 = por %p107, %p108
      %p111 = scmp.ne.s32.totalorder %s96, %s110
      %p112 = scmp.eq.s32.totalorder %s23, 0
      %p113 = por %p111, %p112
      %s115 = sadd.s32 %s114, 1
      %p118 = scmp.eq.s32.totalorder %s17, 1
      %p119 = scmp.ne.s32.totalorder %s114, %s116
      %p120 = scmp.eq.s32.totalorder %s17, 0
      %p121 = por %p119, %p120
      %p122 = scmp.ne.s32.totalorder %s114, %s116
      %p123 = scmp.eq.s32.totalorder %s22, 1
      %p124 = por %p122, %p123
      %p125 = scmp.ne.s32.totalorder %s116, %s117
      %p126 = scmp.eq.s32.totalorder %s22, 0
      %p127 = por %p125, %p126
      %p128 = scmp.ne.s32.totalorder %s116, %s117
      %p129 = scmp.eq.s32.totalorder %s23, 1
      %p130 = por %p128, %p129
      %p132 = scmp.ne.s32.totalorder %s117, %s131
      %p133 = scmp.eq.s32.totalorder %s23, 0
      %p134 = por %p132, %p133
      %s135 = ssub.s32 %s17, %s24
      %p136 = scmp.eq.s32.totalorder %s135, 0
      %s138 = sadd.s32 %s137, 1
      %s139 = scalar_select %p136, %s137, %s138
      %p142 = pneg %p136
      %p143 = scmp.eq.s32.totalorder %s17, 1
      %p144 = por %p142, %p143
      %p145 = scmp.ne.s32.totalorder %s137, %s140
      %p146 = scmp.eq.s32.totalorder %s17, 0
      %p147 = por %p145, %p146
      %p148 = scmp.ne.s32.totalorder %s137, %s140
      %p149 = scmp.eq.s32.totalorder %s22, 1
      %p150 = por %p148, %p149
      %p151 = scmp.ne.s32.totalorder %s140, %s141
      %p152 = scmp.eq.s32.totalorder %s22, 0
      %p153 = por %p151, %p152
      %p154 = scmp.ne.s32.totalorder %s140, %s141
      %p155 = scmp.eq.s32.totalorder %s23, 1
      %p156 = por %p154, %p155
      %p158 = scmp.ne.s32.totalorder %s141, %s157
      %p159 = scmp.eq.s32.totalorder %s23, 0
      %p160 = por %p158, %p159
      %p161 = scmp.le.s32.totalorder 1, %s17
      %p162 = scmp.lt.s32.totalorder %s17, 3
      %p163 = pnand %p161, %p162
      %p164 = pneg %p163
      // Predicated region
      $region9: #{tpu_custom_call.1} parent=5 // pred_check
        _
      $region10: #{tpu_custom_call.1} parent=5 // pred_check_branch
        %166 = sbr.rel (%p163) target = $region12
      $region11: #{tpu_custom_call.1} parent=5 // pred_region
        %s167 = ssub.s32 %s17, 1
        // Predicated region
        $region13: #{tpu_custom_call.1} parent=11 // pred_check
          %p168 = pneg %p64
        $region14: #{tpu_custom_call.1} parent=11 // pred_check_branch
          %170 = sbr.rel (%p168) target = $region16
        $region15: #{tpu_custom_call.1} parent=11 // pred_region
          _
        $region16: #{tpu_custom_call.1} parent=11 // pred_fallthru
          _
        // Predicated region
        $region17: #{tpu_custom_call.1} parent=11 // pred_check
          %p171 = pneg %p85
        $region18: #{tpu_custom_call.1} parent=11 // pred_check_branch
          %173 = sbr.rel (%p171) target = $region20
        $region19: #{tpu_custom_call.1} parent=11 // pred_region
          _
        $region20: #{tpu_custom_call.1} parent=11 // pred_fallthru
          _
        // Predicated region
        $region21: #{tpu_custom_call.1} parent=11 // pred_check
          %p174 = pneg %p106
        $region22: #{tpu_custom_call.1} parent=11 // pred_check_branch
          %176 = sbr.rel (%p174) target = $region24
        $region23: #{tpu_custom_call.1} parent=11 // pred_region
          _
        $region24: #{tpu_custom_call.1} parent=11 // pred_fallthru
          _
        // Predicated region
        $region25: #{tpu_custom_call.1} parent=11 // pred_check
          %p177 = pneg %p127
        $region26: #{tpu_custom_call.1} parent=11 // pred_check_branch
          %179 = sbr.rel (%p177) target = $region28
        $region27: #{tpu_custom_call.1} parent=11 // pred_region
          _
        $region28: #{tpu_custom_call.1} parent=11 // pred_fallthru
          _
      $region12: #{tpu_custom_call.1} parent=5 // pred_fallthru
        _
      %p180 = scmp.lt.s32.totalorder %s17, 2
      // Predicated region
      $region29: #{tpu_custom_call.1} parent=5 // pred_check
        %p181 = pneg %p180
      $region30: #{tpu_custom_call.1} parent=5 // pred_check_branch
        %183 = sbr.rel (%p181) target = $region32
      $region31: #{tpu_custom_call.1} parent=5 // pred_region
        // Predicated region
        $region33: #{tpu_custom_call.1} parent=31 // pred_check
          %p184 = pneg %p37
        $region34: #{tpu_custom_call.1} parent=31 // pred_check_branch
          %186 = sbr.rel (%p184) target = $region36
        $region35: #{tpu_custom_call.1} parent=31 // pred_region
          %s187 = sand.u32 %s27, 1
          %s188 = scalar_lea.sflag [#allocation3], %s187
          %s189 = sand.u32 %s27, 1
          %s190 = smul.addr %s189, 512
          %s191 = scalar_lea.vmem [#allocation2], %s190
          %s193 = ssub.s32 8192, 8192
          %194 = vsyncadd %s188, %s193
          %s195 = smul.addr %s17, 64
          %s196 = smul.addr %s195, 128
          %s197 = scalar_lea.hbm %s0, %s196
          %s198 = sshll.u32 %s191, 4
          %s199 = int_to_ptr.vmem [resolvable:$true] %s198
          %204 = dma.hbm_to_vmem [thread:$0]  %s197, 8192, %s199, %s188, 1024, 1024, 64
        $region36: #{tpu_custom_call.1} parent=31 // pred_fallthru
          _
      $region32: #{tpu_custom_call.1} parent=5 // pred_fallthru
        _
      %p205 = scmp.le.s32.totalorder 1, %s17
      %p206 = scmp.lt.s32.totalorder %s17, 3
      %p207 = pnand %p205, %p206
      %p208 = pneg %p207
      // Predicated region
      $region37: #{tpu_custom_call.1} parent=5 // pred_check
        _
      $region38: #{tpu_custom_call.1} parent=5 // pred_check_branch
        %210 = sbr.rel (%p207) target = $region40
      $region39: #{tpu_custom_call.1} parent=5 // pred_region
        %s211 = ssub.s32 %s17, 1
        %s212 = sand.u32 %s30, 1
        %s213 = scalar_lea.sflag [#allocation3], %s212
        %s214 = sand.u32 %s30, 1
        %s215 = smul.addr %s214, 512
        %s216 = scalar_lea.vmem [#allocation2], %s215
        // Predicated region
        $region41: #{tpu_custom_call.1} parent=39 // pred_check
          %p217 = pneg %p43
        $region42: #{tpu_custom_call.1} parent=39 // pred_check_branch
          %219 = sbr.rel (%p217) target = $region44
        $region43: #{tpu_custom_call.1} parent=39 // pred_region
          %220 = dma.done %s213, 8192
        $region44: #{tpu_custom_call.1} parent=39 // pred_fallthru
          _
        %s221 = sand.u32 %s30, 1
        %s222 = scalar_lea.sflag [#allocation3], %s221
        %s223 = sand.u32 %s30, 1
        %s224 = smul.addr %s223, 512
        %s225 = scalar_lea.vmem [#allocation2], %s224
        %p226 = pneg %p43
        %p227 = pneg %p40
        %p228 = pneg %p64
        %p229 = pneg %p61
        %p230 = pneg %p85
        %p231 = pneg %p82
        %p232 = pneg %p106
        %p233 = pneg %p103
        %p234 = pneg %p127
        %p235 = pneg %p124
        %p236 = pneg %p153
        %p237 = pneg %p150
        %s238 = sand.u32 %s140, 1
        %s239 = scalar_lea.sflag [#allocation4], %s238
        %s240 = sand.u32 %s140, 1
        %s241 = smul.addr %s240, 512
        %s242 = scalar_lea.vmem [#allocation5], %s241
        %v243 = vld [vmem:[%s216] sm:$0xff]
        %v244 = vld [vmem:[%s216 + $0x8] sm:$0xff]
        %v245 = vld [vmem:[%s216 + $0x10] sm:$0xff]
        %v246 = vld [vmem:[%s216 + $0x18] sm:$0xff]
        %v247 = vld [vmem:[%s216 + $0x20] sm:$0xff]
        %v248 = vld [vmem:[%s216 + $0x28] sm:$0xff]
        %v249 = vld [vmem:[%s216 + $0x30] sm:$0xff]
        %v250 = vld [vmem:[%s216 + $0x38] sm:$0xff]
        %v251 = vld [vmem:[%s216 + $0x40] sm:$0xff]
        %v252 = vld [vmem:[%s216 + $0x48] sm:$0xff]
        %v253 = vld [vmem:[%s216 + $0x50] sm:$0xff]
        %v254 = vld [vmem:[%s216 + $0x58] sm:$0xff]
        %v255 = vld [vmem:[%s216 + $0x60] sm:$0xff]
        %v256 = vld [vmem:[%s216 + $0x68] sm:$0xff]
        %v257 = vld [vmem:[%s216 + $0x70] sm:$0xff]
        %v258 = vld [vmem:[%s216 + $0x78] sm:$0xff]
        %v259 = vld [vmem:[%s216 + $0x80] sm:$0xff]
        %v260 = vld [vmem:[%s216 + $0x88] sm:$0xff]
        %v261 = vld [vmem:[%s216 + $0x90] sm:$0xff]
        %v262 = vld [vmem:[%s216 + $0x98] sm:$0xff]
        %v263 = vld [vmem:[%s216 + $0xa0] sm:$0xff]
        %v264 = vld [vmem:[%s216 + $0xa8] sm:$0xff]
        %v265 = vld [vmem:[%s216 + $0xb0] sm:$0xff]
        %v266 = vld [vmem:[%s216 + $0xb8] sm:$0xff]
        %v267 = vld [vmem:[%s216 + $0xc0] sm:$0xff]
        %v268 = vld [vmem:[%s216 + $0xc8] sm:$0xff]
        %v269 = vld [vmem:[%s216 + $0xd0] sm:$0xff]
        %v270 = vld [vmem:[%s216 + $0xd8] sm:$0xff]
        %v271 = vld [vmem:[%s216 + $0xe0] sm:$0xff]
        %v272 = vld [vmem:[%s216 + $0xe8] sm:$0xff]
        %v273 = vld [vmem:[%s216 + $0xf0] sm:$0xff]
        %v274 = vld [vmem:[%s216 + $0xf8] sm:$0xff]
        %v275 = vld [vmem:[%s216 + $0x100] sm:$0xff]
        %v276 = vld [vmem:[%s216 + $0x108] sm:$0xff]
        %v277 = vld [vmem:[%s216 + $0x110] sm:$0xff]
        %v278 = vld [vmem:[%s216 + $0x118] sm:$0xff]
        %v279 = vld [vmem:[%s216 + $0x120] sm:$0xff]
        %v280 = vld [vmem:[%s216 + $0x128] sm:$0xff]
        %v281 = vld [vmem:[%s216 + $0x130] sm:$0xff]
        %v282 = vld [vmem:[%s216 + $0x138] sm:$0xff]
        %v283 = vld [vmem:[%s216 + $0x140] sm:$0xff]
        %v284 = vld [vmem:[%s216 + $0x148] sm:$0xff]
        %v285 = vld [vmem:[%s216 + $0x150] sm:$0xff]
        %v286 = vld [vmem:[%s216 + $0x158] sm:$0xff]
        %v287 = vld [vmem:[%s216 + $0x160] sm:$0xff]
        %v288 = vld [vmem:[%s216 + $0x168] sm:$0xff]
        %v289 = vld [vmem:[%s216 + $0x170] sm:$0xff]
        %v290 = vld [vmem:[%s216 + $0x178] sm:$0xff]
        %v291 = vld [vmem:[%s216 + $0x180] sm:$0xff]
        %v292 = vld [vmem:[%s216 + $0x188] sm:$0xff]
        %v293 = vld [vmem:[%s216 + $0x190] sm:$0xff]
        %v294 = vld [vmem:[%s216 + $0x198] sm:$0xff]
        %v295 = vld [vmem:[%s216 + $0x1a0] sm:$0xff]
        %v296 = vld [vmem:[%s216 + $0x1a8] sm:$0xff]
        %v297 = vld [vmem:[%s216 + $0x1b0] sm:$0xff]
        %v298 = vld [vmem:[%s216 + $0x1b8] sm:$0xff]
        %v299 = vld [vmem:[%s216 + $0x1c0] sm:$0xff]
        %v300 = vld [vmem:[%s216 + $0x1c8] sm:$0xff]
        %v301 = vld [vmem:[%s216 + $0x1d0] sm:$0xff]
        %v302 = vld [vmem:[%s216 + $0x1d8] sm:$0xff]
        %v303 = vld [vmem:[%s216 + $0x1e0] sm:$0xff]
        %v304 = vld [vmem:[%s216 + $0x1e8] sm:$0xff]
        %v305 = vld [vmem:[%s216 + $0x1f0] sm:$0xff]
        %v306 = vld [vmem:[%s216 + $0x1f8] sm:$0xff]
        %v307 = vadd.f32 %v243, %v244
        %v308 = vadd.f32 %v307, %v245
        %v309 = vadd.f32 %v308, %v246
        %v310 = vadd.f32 %v309, %v247
        %v311 = vadd.f32 %v310, %v248
        %v312 = vadd.f32 %v311, %v249
        %v313 = vadd.f32 %v312, %v250
        %314 = vadd.xlane.f32.xlu0 %v313
        %v315 = vpop.xlane.xlu0 %314
        %v316 = vadd.f32 %v251, %v252
        %v317 = vadd.f32 %v316, %v253
        %v318 = vadd.f32 %v317, %v254
        %v319 = vadd.f32 %v318, %v255
        %v320 = vadd.f32 %v319, %v256
        %v321 = vadd.f32 %v320, %v257
        %v322 = vadd.f32 %v321, %v258
        %323 = vadd.xlane.f32.xlu0 %v322
        %v324 = vpop.xlane.xlu0 %323
        %v325 = vadd.f32 %v259, %v260
        %v326 = vadd.f32 %v325, %v261
        %v327 = vadd.f32 %v326, %v262
        %v328 = vadd.f32 %v327, %v263
        %v329 = vadd.f32 %v328, %v264
        %v330 = vadd.f32 %v329, %v265
        %v331 = vadd.f32 %v330, %v266
        %332 = vadd.xlane.f32.xlu0 %v331
        %v333 = vpop.xlane.xlu0 %332
        %v334 = vadd.f32 %v267, %v268
        %v335 = vadd.f32 %v334, %v269
        %v336 = vadd.f32 %v335, %v270
        %v337 = vadd.f32 %v336, %v271
        %v338 = vadd.f32 %v337, %v272
        %v339 = vadd.f32 %v338, %v273
        %v340 = vadd.f32 %v339, %v274
        %341 = vadd.xlane.f32.xlu0 %v340
        %v342 = vpop.xlane.xlu0 %341
        %v343 = vadd.f32 %v275, %v276
        %v344 = vadd.f32 %v343, %v277
        %v345 = vadd.f32 %v344, %v278
        %v346 = vadd.f32 %v345, %v279
        %v347 = vadd.f32 %v346, %v280
        %v348 = vadd.f32 %v347, %v281
        %v349 = vadd.f32 %v348, %v282
        %350 = vadd.xlane.f32.xlu0 %v349
        %v351 = vpop.xlane.xlu0 %350
        %v352 = vadd.f32 %v283, %v284
        %v353 = vadd.f32 %v352, %v285
        %v354 = vadd.f32 %v353, %v286
        %v355 = vadd.f32 %v354, %v287
        %v356 = vadd.f32 %v355, %v288
        %v357 = vadd.f32 %v356, %v289
        %v358 = vadd.f32 %v357, %v290
        %359 = vadd.xlane.f32.xlu0 %v358
        %v360 = vpop.xlane.xlu0 %359
        %v361 = vadd.f32 %v291, %v292
        %v362 = vadd.f32 %v361, %v293
        %v363 = vadd.f32 %v362, %v294
        %v364 = vadd.f32 %v363, %v295
        %v365 = vadd.f32 %v364, %v296
        %v366 = vadd.f32 %v365, %v297
        %v367 = vadd.f32 %v366, %v298
        %368 = vadd.xlane.f32.xlu0 %v367
        %v369 = vpop.xlane.xlu0 %368
        %v370 = vadd.f32 %v299, %v300
        %v371 = vadd.f32 %v370, %v301
        %v372 = vadd.f32 %v371, %v302
        %v373 = vadd.f32 %v372, %v303
        %v374 = vadd.f32 %v373, %v304
        %v375 = vadd.f32 %v374, %v305
        %v376 = vadd.f32 %v375, %v306
        %377 = vadd.xlane.f32.xlu0 %v376
        %v378 = vpop.xlane.xlu0 %377
        %v379 = vmul.f32 %v315, 0.0009765625
        %v380 = vmul.f32 %v324, 0.0009765625
        %v381 = vmul.f32 %v333, 0.0009765625
        %v382 = vmul.f32 %v342, 0.0009765625
        %v383 = vmul.f32 %v351, 0.0009765625
        %v384 = vmul.f32 %v360, 0.0009765625
        %v385 = vmul.f32 %v369, 0.0009765625
        %v386 = vmul.f32 %v378, 0.0009765625
        %v387 = vld [vmem:[%s1] sm:$0xff]
        %v388 = vld [vmem:[%s1 + $0x8] sm:$0xff]
        %v389 = vld [vmem:[%s1 + $0x10] sm:$0xff]
        %v390 = vld [vmem:[%s1 + $0x18] sm:$0xff]
        %v391 = vld [vmem:[%s1 + $0x20] sm:$0xff]
        %v392 = vld [vmem:[%s1 + $0x28] sm:$0xff]
        %v393 = vld [vmem:[%s1 + $0x30] sm:$0xff]
        %v394 = vld [vmem:[%s1 + $0x38] sm:$0xff]
        %v395 = vld [vmem:[%s2] sm:$0x1]
        %v404 = vlaneseq
        %v405 = vand.u32 %v404, 127
        %v406 = vlaneseq
        %v407 = vshrl.u32 %v406, 7
        %v408 = vsub.s32 %v405, %v407
        %v409 = vrot.slane %v379, %v408
        %v410 = vadd.s32 %v405, 4294967288
        %v411 = vlaneseq
        %v412 = vshrl.u32 %v411, 7
        %v413 = vsub.s32 %v410, %v412
        %v414 = vrot.slane %v380, %v413
        %vm415 = vcmask 130112
        %v416 = vsel %vm415, %v414, %v409
        %v417 = vadd.s32 %v405, 4294967280
        %v418 = vlaneseq
        %v419 = vshrl.u32 %v418, 7
        %v420 = vsub.s32 %v417, %v419
        %v421 = vrot.slane %v381, %v420
        %vm422 = vcmask 195712
        %v423 = vsel %vm422, %v421, %v416
        %v424 = vadd.s32 %v405, 4294967272
        %v425 = vlaneseq
        %v426 = vshrl.u32 %v425, 7
        %v427 = vsub.s32 %v424, %v426
        %v428 = vrot.slane %v382, %v427
        %vm429 = vcmask 261312
        %v430 = vsel %vm429, %v428, %v423
        %v431 = vadd.s32 %v405, 4294967264
        %v432 = vlaneseq
        %v433 = vshrl.u32 %v432, 7
        %v434 = vsub.s32 %v431, %v433
        %v435 = vrot.slane %v383, %v434
        %vm436 = vcmask 326912
        %v437 = vsel %vm436, %v435, %v430
        %v438 = vadd.s32 %v405, 4294967256
        %v439 = vlaneseq
        %v440 = vshrl.u32 %v439, 7
        %v441 = vsub.s32 %v438, %v440
        %v442 = vrot.slane %v384, %v441
        %vm443 = vcmask 392512
        %v444 = vsel %vm443, %v442, %v437
        %v445 = vadd.s32 %v405, 4294967248
        %v446 = vlaneseq
        %v447 = vshrl.u32 %v446, 7
        %v448 = vsub.s32 %v445, %v447
        %v449 = vrot.slane %v385, %v448
        %vm450 = vcmask 458112
        %v451 = vsel %vm450, %v449, %v444
        %v452 = vadd.s32 %v405, 4294967240
        %v453 = vlaneseq
        %v454 = vshrl.u32 %v453, 7
        %v455 = vsub.s32 %v452, %v454
        %v456 = vrot.slane %v386, %v455
        %vm457 = vcmask 523712
        %v458 = vsel %vm457, %v456, %v451
        %vm459 = vcmask 523264
        %v460 = vsel %vm459, %v458, 0
        %462 = vmatprep.subr.mxu0 0.0
        %463 = vmatpush1.msra.mxu0 %v387
        %464 = vmatprep.subr.mxu0 0.0
        %465 = vmatpush1.msra.mxu0 %v388
        %466 = vmatprep.subr.mxu0 0.0
        %467 = vmatpush1.msra.mxu0 %v389
        %468 = vmatprep.subr.mxu0 0.0
        %469 = vmatpush1.msra.mxu0 %v390
        %470 = vmatprep.subr.mxu0 0.0
        %471 = vmatpush1.msra.mxu0 %v391
        %472 = vmatprep.subr.mxu0 0.0
        %473 = vmatpush1.msra.mxu0 %v392
        %474 = vmatprep.subr.mxu0 0.0
        %475 = vmatpush1.msra.mxu0 %v393
        %476 = vmatprep.subr.mxu0 0.0
        %477 = vmatpush1.msra.mxu0 %v394
        %478 = vmatprep.subr.mxu0 0.0
        %479 = vmatpush1.msra.mxu0 0.0
        %480 = vmatprep.subr.mxu0 0.0
        %481 = vmatpush1.msra.mxu0 0.0
        %482 = vmatprep.subr.mxu0 0.0
        %483 = vmatpush1.msra.mxu0 0.0
        %484 = vmatprep.subr.mxu0 0.0
        %485 = vmatpush1.msra.mxu0 0.0
        %486 = vmatprep.subr.mxu0 0.0
        %487 = vmatpush1.msra.mxu0 0.0
        %488 = vmatprep.subr.mxu0 0.0
        %489 = vmatpush1.msra.mxu0 0.0
        %490 = vmatprep.subr.mxu0 0.0
        %491 = vmatpush1.msra.mxu0 0.0
        %492 = vmatprep.subr.mxu0 0.0
        %493 = vmatpush1.msra.mxu0 0.0
        %494 = vmatprep.subr.mxu0 0.0
        %495 = vmatpush1.msra.mxu0 0.0
        %496 = vmatprep.subr.mxu0 0.0
        %497 = vmatpush1.msra.mxu0 0.0
        %498 = vmatprep.subr.mxu0 0.0
        %499 = vmatpush1.msra.mxu0 0.0
        %500 = vmatprep.subr.mxu0 0.0
        %501 = vmatpush1.msra.mxu0 0.0
        %502 = vmatprep.subr.mxu0 0.0
        %503 = vmatpush1.msra.mxu0 0.0
        %504 = vmatprep.subr.mxu0 0.0
        %505 = vmatpush1.msra.mxu0 0.0
        %506 = vmatprep.subr.mxu0 0.0
        %507 = vmatpush1.msra.mxu0 0.0
        %508 = vmatprep.subr.mxu0 0.0
        %509 = vmatpush1.msra.mxu0 0.0
        %510 = vmatprep.subr.mxu0 0.0
        %511 = vmatpush1.msra.mxu0 0.0
        %512 = vmatprep.subr.mxu0 0.0
        %513 = vmatpush1.msra.mxu0 0.0
        %514 = vmatprep.subr.mxu0 0.0
        %515 = vmatpush1.msra.mxu0 0.0
        %516 = vmatprep.subr.mxu0 0.0
        %517 = vmatpush1.msra.mxu0 0.0
        %518 = vmatprep.subr.mxu0 0.0
        %519 = vmatpush1.msra.mxu0 0.0
        %520 = vmatprep.subr.mxu0 0.0
        %521 = vmatpush1.msra.mxu0 0.0
        %522 = vmatprep.subr.mxu0 0.0
        %523 = vmatpush1.msra.mxu0 0.0
        %524 = vmatprep.subr.mxu0 0.0
        %525 = vmatpush1.msra.mxu0 0.0
        %526 = vmatprep.mubr.f32.mxu0 0.0
        %527 = vmatmul.mubr.f32.gmra.mrb[0].mxu0 %v460
        %v528 = vpop.f32.mrb[0].mxu0
        %v529 = vadd.f32 %v395, %v528
        %v530 = vpop.f32.mrb[0].mxu0
        %531 = vdwg.mxu0
        %v532 = vmax.f32 %v529, 0.0
        %v533 = vld [vmem:[%s3] sm:$0xff]
        %v534 = vld [vmem:[%s3 + $0x8] sm:$0xff]
        %v535 = vld [vmem:[%s4] sm:$0x1]
        %vm536 = vcmask 130048
        %v538 = vsel %vm536, %v532, 0
        %540 = vmatprep.subr.mxu0 0.0
        %541 = vmatpush1.msra.mxu0 %v533
        %542 = vmatprep.subr.mxu0 0.0
        %543 = vmatpush1.msra.mxu0 %v534
        %544 = vmatprep.subr.mxu0 0.0
        %545 = vmatpush1.msra.mxu0 0.0
        %546 = vmatprep.subr.mxu0 0.0
        %547 = vmatpush1.msra.mxu0 0.0
        %548 = vmatprep.subr.mxu0 0.0
        %549 = vmatpush1.msra.mxu0 0.0
        %550 = vmatprep.subr.mxu0 0.0
        %551 = vmatpush1.msra.mxu0 0.0
        %552 = vmatprep.subr.mxu0 0.0
        %553 = vmatpush1.msra.mxu0 0.0
        %554 = vmatprep.subr.mxu0 0.0
        %555 = vmatpush1.msra.mxu0 0.0
        %556 = vmatprep.subr.mxu0 0.0
        %557 = vmatpush1.msra.mxu0 0.0
        %558 = vmatprep.subr.mxu0 0.0
        %559 = vmatpush1.msra.mxu0 0.0
        %560 = vmatprep.subr.mxu0 0.0
        %561 = vmatpush1.msra.mxu0 0.0
        %562 = vmatprep.subr.mxu0 0.0
        %563 = vmatpush1.msra.mxu0 0.0
        %564 = vmatprep.subr.mxu0 0.0
        %565 = vmatpush1.msra.mxu0 0.0
        %566 = vmatprep.subr.mxu0 0.0
        %567 = vmatpush1.msra.mxu0 0.0
        %568 = vmatprep.subr.mxu0 0.0
        %569 = vmatpush1.msra.mxu0 0.0
        %570 = vmatprep.subr.mxu0 0.0
        %571 = vmatpush1.msra.mxu0 0.0
        %572 = vmatprep.subr.mxu0 0.0
        %573 = vmatpush1.msra.mxu0 0.0
        %574 = vmatprep.subr.mxu0 0.0
        %575 = vmatpush1.msra.mxu0 0.0
        %576 = vmatprep.subr.mxu0 0.0
        %577 = vmatpush1.msra.mxu0 0.0
        %578 = vmatprep.subr.mxu0 0.0
        %579 = vmatpush1.msra.mxu0 0.0
        %580 = vmatprep.subr.mxu0 0.0
        %581 = vmatpush1.msra.mxu0 0.0
        %582 = vmatprep.subr.mxu0 0.0
        %583 = vmatpush1.msra.mxu0 0.0
        %584 = vmatprep.subr.mxu0 0.0
        %585 = vmatpush1.msra.mxu0 0.0
        %586 = vmatprep.subr.mxu0 0.0
        %587 = vmatpush1.msra.mxu0 0.0
        %588 = vmatprep.subr.mxu0 0.0
        %589 = vmatpush1.msra.mxu0 0.0
        %590 = vmatprep.subr.mxu0 0.0
        %591 = vmatpush1.msra.mxu0 0.0
        %592 = vmatprep.subr.mxu0 0.0
        %593 = vmatpush1.msra.mxu0 0.0
        %594 = vmatprep.subr.mxu0 0.0
        %595 = vmatpush1.msra.mxu0 0.0
        %596 = vmatprep.subr.mxu0 0.0
        %597 = vmatpush1.msra.mxu0 0.0
        %598 = vmatprep.subr.mxu0 0.0
        %599 = vmatpush1.msra.mxu0 0.0
        %600 = vmatprep.subr.mxu0 0.0
        %601 = vmatpush1.msra.mxu0 0.0
        %602 = vmatprep.subr.mxu0 0.0
        %603 = vmatpush1.msra.mxu0 0.0
        %604 = vmatprep.mubr.f32.mxu0 0.0
        %605 = vmatmul.mubr.f32.gmra.mrb[0].mxu0 %v538
        %v606 = vpop.f32.mrb[0].mxu0
        %v607 = vadd.f32 %v535, %v606
        %v608 = vpop.f32.mrb[0].mxu0
        %609 = vdwg.mxu0
        %v610 = vsub.f32 0.0, %v607
        %v611 = vmul.f32 %v610, 1.442695
        %v612 = vpow.pop %v611
        %v613 = vadd.f32 %v612, 1.0
        %v614 = vrcp.pop %v613
        %v615 = vmul.f32 1.0, %v614
        %v616 = vlaneseq
        %v617 = vshrl.u32 %v616, 7
        %v618 = vsub.s32 0, %v617
        %v619 = vrot.slane %v615, %v618
        %621 = vbcast.lane.b32.xlu0 %v619, 256
        %v622 = vpop.permute.xlu0 %621
        %s624 = sor.u32 256, 8
        %625 = vbcast.lane.b32.xlu0 %v619, %s624
        %v626 = vpop.permute.xlu0 %625
        %s628 = sor.u32 256, 16
        %629 = vbcast.lane.b32.xlu0 %v619, %s628
        %v630 = vpop.permute.xlu0 %629
        %s632 = sor.u32 256, 24
        %633 = vbcast.lane.b32.xlu0 %v619, %s632
        %v634 = vpop.permute.xlu0 %633
        %s636 = sor.u32 256, 32
        %637 = vbcast.lane.b32.xlu0 %v619, %s636
        %v638 = vpop.permute.xlu0 %637
        %s640 = sor.u32 256, 40
        %641 = vbcast.lane.b32.xlu0 %v619, %s640
        %v642 = vpop.permute.xlu0 %641
        %s644 = sor.u32 256, 48
        %645 = vbcast.lane.b32.xlu0 %v619, %s644
        %v646 = vpop.permute.xlu0 %645
        %s648 = sor.u32 256, 56
        %649 = vbcast.lane.b32.xlu0 %v619, %s648
        %v650 = vpop.permute.xlu0 %649
        %v651 = vmul.f32 %v243, %v622
        %v652 = vmul.f32 %v244, %v622
        %v653 = vmul.f32 %v245, %v622
        %v654 = vmul.f32 %v246, %v622
        %v655 = vmul.f32 %v247, %v622
        %v656 = vmul.f32 %v248, %v622
        %v657 = vmul.f32 %v249, %v622
        %v658 = vmul.f32 %v250, %v622
        %v659 = vmul.f32 %v251, %v626
        %v660 = vmul.f32 %v252, %v626
        %v661 = vmul.f32 %v253, %v626
        %v662 = vmul.f32 %v254, %v626
        %v663 = vmul.f32 %v255, %v626
        %v664 = vmul.f32 %v256, %v626
        %v665 = vmul.f32 %v257, %v626
        %v666 = vmul.f32 %v258, %v626
        %v667 = vmul.f32 %v259, %v630
        %v668 = vmul.f32 %v260, %v630
        %v669 = vmul.f32 %v261, %v630
        %v670 = vmul.f32 %v262, %v630
        %v671 = vmul.f32 %v263, %v630
        %v672 = vmul.f32 %v264, %v630
        %v673 = vmul.f32 %v265, %v630
        %v674 = vmul.f32 %v266, %v630
        %v675 = vmul.f32 %v267, %v634
        %v676 = vmul.f32 %v268, %v634
        %v677 = vmul.f32 %v269, %v634
        %v678 = vmul.f32 %v270, %v634
        %v679 = vmul.f32 %v271, %v634
        %v680 = vmul.f32 %v272, %v634
        %v681 = vmul.f32 %v273, %v634
        %v682 = vmul.f32 %v274, %v634
        %v683 = vmul.f32 %v275, %v638
        %v684 = vmul.f32 %v276, %v638
        %v685 = vmul.f32 %v277, %v638
        %v686 = vmul.f32 %v278, %v638
        %v687 = vmul.f32 %v279, %v638
        %v688 = vmul.f32 %v280, %v638
        %v689 = vmul.f32 %v281, %v638
        %v690 = vmul.f32 %v282, %v638
        %v691 = vmul.f32 %v283, %v642
        %v692 = vmul.f32 %v284, %v642
        %v693 = vmul.f32 %v285, %v642
        %v694 = vmul.f32 %v286, %v642
        %v695 = vmul.f32 %v287, %v642
        %v696 = vmul.f32 %v288, %v642
        %v697 = vmul.f32 %v289, %v642
        %v698 = vmul.f32 %v290, %v642
        %v699 = vmul.f32 %v291, %v646
        %v700 = vmul.f32 %v292, %v646
        %v701 = vmul.f32 %v293, %v646
        %v702 = vmul.f32 %v294, %v646
        %v703 = vmul.f32 %v295, %v646
        %v704 = vmul.f32 %v296, %v646
        %v705 = vmul.f32 %v297, %v646
        %v706 = vmul.f32 %v298, %v646
        %v707 = vmul.f32 %v299, %v650
        %v708 = vmul.f32 %v300, %v650
        %v709 = vmul.f32 %v301, %v650
        %v710 = vmul.f32 %v302, %v650
        %v711 = vmul.f32 %v303, %v650
        %v712 = vmul.f32 %v304, %v650
        %v713 = vmul.f32 %v305, %v650
        %v714 = vmul.f32 %v306, %v650
        %715 = vst [vmem:[%s242] sm:$0xff] %v651
        %716 = vst [vmem:[%s242 + $0x8] sm:$0xff] %v652
        %717 = vst [vmem:[%s242 + $0x10] sm:$0xff] %v653
        %718 = vst [vmem:[%s242 + $0x18] sm:$0xff] %v654
        %719 = vst [vmem:[%s242 + $0x20] sm:$0xff] %v655
        %720 = vst [vmem:[%s242 + $0x28] sm:$0xff] %v656
        %721 = vst [vmem:[%s242 + $0x30] sm:$0xff] %v657
        %722 = vst [vmem:[%s242 + $0x38] sm:$0xff] %v658
        %723 = vst [vmem:[%s242 + $0x40] sm:$0xff] %v659
        %724 = vst [vmem:[%s242 + $0x48] sm:$0xff] %v660
        %725 = vst [vmem:[%s242 + $0x50] sm:$0xff] %v661
        %726 = vst [vmem:[%s242 + $0x58] sm:$0xff] %v662
        %727 = vst [vmem:[%s242 + $0x60] sm:$0xff] %v663
        %728 = vst [vmem:[%s242 + $0x68] sm:$0xff] %v664
        %729 = vst [vmem:[%s242 + $0x70] sm:$0xff] %v665
        %730 = vst [vmem:[%s242 + $0x78] sm:$0xff] %v666
        %731 = vst [vmem:[%s242 + $0x80] sm:$0xff] %v667
        %732 = vst [vmem:[%s242 + $0x88] sm:$0xff] %v668
        %733 = vst [vmem:[%s242 + $0x90] sm:$0xff] %v669
        %734 = vst [vmem:[%s242 + $0x98] sm:$0xff] %v670
        %735 = vst [vmem:[%s242 + $0xa0] sm:$0xff] %v671
        %736 = vst [vmem:[%s242 + $0xa8] sm:$0xff] %v672
        %737 = vst [vmem:[%s242 + $0xb0] sm:$0xff] %v673
        %738 = vst [vmem:[%s242 + $0xb8] sm:$0xff] %v674
        %739 = vst [vmem:[%s242 + $0xc0] sm:$0xff] %v675
        %740 = vst [vmem:[%s242 + $0xc8] sm:$0xff] %v676
        %741 = vst [vmem:[%s242 + $0xd0] sm:$0xff] %v677
        %742 = vst [vmem:[%s242 + $0xd8] sm:$0xff] %v678
        %743 = vst [vmem:[%s242 + $0xe0] sm:$0xff] %v679
        %744 = vst [vmem:[%s242 + $0xe8] sm:$0xff] %v680
        %745 = vst [vmem:[%s242 + $0xf0] sm:$0xff] %v681
        %746 = vst [vmem:[%s242 + $0xf8] sm:$0xff] %v682
        %747 = vst [vmem:[%s242 + $0x100] sm:$0xff] %v683
        %748 = vst [vmem:[%s242 + $0x108] sm:$0xff] %v684
        %749 = vst [vmem:[%s242 + $0x110] sm:$0xff] %v685
        %750 = vst [vmem:[%s242 + $0x118] sm:$0xff] %v686
        %751 = vst [vmem:[%s242 + $0x120] sm:$0xff] %v687
        %752 = vst [vmem:[%s242 + $0x128] sm:$0xff] %v688
        %753 = vst [vmem:[%s242 + $0x130] sm:$0xff] %v689
        %754 = vst [vmem:[%s242 + $0x138] sm:$0xff] %v690
        %755 = vst [vmem:[%s242 + $0x140] sm:$0xff] %v691
        %756 = vst [vmem:[%s242 + $0x148] sm:$0xff] %v692
        %757 = vst [vmem:[%s242 + $0x150] sm:$0xff] %v693
        %758 = vst [vmem:[%s242 + $0x158] sm:$0xff] %v694
        %759 = vst [vmem:[%s242 + $0x160] sm:$0xff] %v695
        %760 = vst [vmem:[%s242 + $0x168] sm:$0xff] %v696
        %761 = vst [vmem:[%s242 + $0x170] sm:$0xff] %v697
        %762 = vst [vmem:[%s242 + $0x178] sm:$0xff] %v698
        %763 = vst [vmem:[%s242 + $0x180] sm:$0xff] %v699
        %764 = vst [vmem:[%s242 + $0x188] sm:$0xff] %v700
        %765 = vst [vmem:[%s242 + $0x190] sm:$0xff] %v701
        %766 = vst [vmem:[%s242 + $0x198] sm:$0xff] %v702
        %767 = vst [vmem:[%s242 + $0x1a0] sm:$0xff] %v703
        %768 = vst [vmem:[%s242 + $0x1a8] sm:$0xff] %v704
        %769 = vst [vmem:[%s242 + $0x1b0] sm:$0xff] %v705
        %770 = vst [vmem:[%s242 + $0x1b8] sm:$0xff] %v706
        %771 = vst [vmem:[%s242 + $0x1c0] sm:$0xff] %v707
        %772 = vst [vmem:[%s242 + $0x1c8] sm:$0xff] %v708
        %773 = vst [vmem:[%s242 + $0x1d0] sm:$0xff] %v709
        %774 = vst [vmem:[%s242 + $0x1d8] sm:$0xff] %v710
        %775 = vst [vmem:[%s242 + $0x1e0] sm:$0xff] %v711
        %776 = vst [vmem:[%s242 + $0x1e8] sm:$0xff] %v712
        %777 = vst [vmem:[%s242 + $0x1f0] sm:$0xff] %v713
        %778 = vst [vmem:[%s242 + $0x1f8] sm:$0xff] %v714
        %s779 = sand.u32 %s140, 1
        %s780 = scalar_lea.sflag [#allocation4], %s779
        %s781 = sand.u32 %s140, 1
        %s782 = smul.addr %s781, 512
        %s783 = scalar_lea.vmem [#allocation5], %s782
        // Predicated region
        $region45: #{tpu_custom_call.1} parent=39 // pred_check
          %p784 = pneg %p150
        $region46: #{tpu_custom_call.1} parent=39 // pred_check_branch
          %786 = sbr.rel (%p784) target = $region48
        $region47: #{tpu_custom_call.1} parent=39 // pred_region
          %s788 = ssub.s32 8192, 8192
          %789 = vsyncadd %s780, %s788
          %s790 = smul.addr %s22, 64
          %s791 = smul.addr %s790, 128
          %s792 = scalar_lea.hbm %s5, %s791
          %s793 = sshll.u32 %s783, 4
          %s794 = int_to_ptr.vmem [resolvable:$true] %s793
          %799 = dma.vmem_to_hbm [thread:$0]  %s794, 8192, %s792, %s780, 1024, 1024, 64
        $region48: #{tpu_custom_call.1} parent=39 // pred_fallthru
          _
      $region40: #{tpu_custom_call.1} parent=5 // pred_fallthru
        _
      %p800 = scmp.le.s32.totalorder 2, %s17
      // Predicated region
      $region49: #{tpu_custom_call.1} parent=5 // pred_check
        %p801 = pneg %p800
      $region50: #{tpu_custom_call.1} parent=5 // pred_check_branch
        %803 = sbr.rel (%p801) target = $region52
      $region51: #{tpu_custom_call.1} parent=5 // pred_region
        %s804 = ssub.s32 %s17, 2
        // Predicated region
        $region53: #{tpu_custom_call.1} parent=51 // pred_check
          %p805 = pneg %p156
        $region54: #{tpu_custom_call.1} parent=51 // pred_check_branch
          %807 = sbr.rel (%p805) target = $region56
        $region55: #{tpu_custom_call.1} parent=51 // pred_region
          %s808 = sand.u32 %s141, 1
          %s809 = scalar_lea.sflag [#allocation4], %s808
          %s810 = sand.u32 %s141, 1
          %s811 = smul.addr %s810, 512
          %s812 = scalar_lea.vmem [#allocation5], %s811
          %813 = dma.done %s809, 8192
        $region56: #{tpu_custom_call.1} parent=51 // pred_fallthru
          _
      $region52: #{tpu_custom_call.1} parent=5 // pred_fallthru
        _
    $region6: #{tpu_custom_call.1} parent=1 // loop_footer
      %s21 = sadd.s32 1, %s17
    $region7: #{tpu_custom_call.1} parent=1 // loop_footer_branch
      %16 = sbr.rel target = $region3
    $region8: #{tpu_custom_call.1} parent=1 // loop_exit
      _
    %814 = vsyncpa [#allocation3], 1
    %s815 = scalar_lea.sflag [#allocation3], 1
    %816 = vsyncpa %s815, 1
    %817 = vsyncpa [#allocation4], 1
    %s818 = scalar_lea.sflag [#allocation4], 1
    %819 = vsyncpa %s818, 1

</llo_original>
